<compile_context>
chip_gen: v5e
topology: v5e:2x2
jax: 0.10.0
libtpu: 0.0.40
codegen_flags: <defaults>
</compile_context>

<pallas_src>
import functools

import jax
import jax.numpy as jnp
from jax.experimental import pallas as pl
from jax.experimental.pallas import tpu as pltpu


def _loss_kernel(pclass_ref, ptime_ref, dclass_ref, dtime_ref, out_ref, *, L_valid):
    logits = pclass_ref[...]                               # [B, C, TL] native dtype
    ptime = ptime_ref[...].astype(jnp.float32)             # [B, TL]
    dclass = dclass_ref[...].astype(jnp.int32)             # [B, TL] (trunc toward 0 == .long())
    dtime = dtime_ref[...].astype(jnp.float32)             # [B, TL]

    B, C, TL = logits.shape

    # Tail mask: lanes whose global index >= L belong to the ragged last block
    # and contain unspecified data -> force their contribution to exactly 0.
    lane = jax.lax.broadcasted_iota(jnp.int32, (1, TL), 1) + pl.program_id(0) * TL
    in_range = lane < L_valid                               # [1, TL]

    # --- cross entropy, reduction='sum', ignore_index=-1 (softmax over axis=1)
    # ce = valid * (log(sum(exp(x - m))) + m - x[target])
    m = jnp.max(logits, axis=1)                             # [B, TL] native dtype
    z = (logits - m[:, None, :]).astype(jnp.float32)        # f32 only at the exp boundary
    lse = jnp.log(jnp.sum(jnp.exp(z), axis=1))              # [B, TL] f32

    cls_iota = jax.lax.broadcasted_iota(jnp.int32, (1, C, 1), 1)       # [1, C, 1]
    onehot = cls_iota == dclass[:, None, :]                            # [B, C, TL] bool
    target = jnp.sum(jnp.where(onehot, logits, 0), axis=1)             # [B, TL] (exact: 1 nonzero)
    ce_valid = jnp.logical_and(dclass != -1, in_range)                 # [B, TL]
    ce = jnp.where(ce_valid,
                   lse + m.astype(jnp.float32) - target.astype(jnp.float32),
                   0.0)                                                # [B, TL]

    # --- masked MSE / 10: weight = clamp(dclass, 0, 1) in {0, 1} (integer targets)
    diff = ptime - dtime
    mse_valid = jnp.logical_and(dclass >= 1, in_range)
    mse = jnp.where(mse_valid, diff * diff * 0.1, 0.0)                 # [B, TL]

    # Batch-only partial sum; lane-wise partials are summed cheaply in the wrapper.
    out_ref[...] = jnp.sum(ce + mse, axis=0, keepdims=True)            # [1, TL]


def _vmem_capacity_bytes():
    """Physical VMEM of the current generation; conservative fallback (v7x/TC)."""
    try:
        return int(pltpu.get_tpu_info().vmem_capacity_bytes)
    except Exception:
        return 64 * 1024 * 1024


def _choose_tile(L, per_lane_bytes, budget):
    """Largest lane tile (multiple of 128, <= L) whose working set fits the
    budget; keep >=2 grid steps when L allows so both v7x TensorCores get work;
    single whole-L block for tiny L."""
    if L <= 128:
        return L
    for tl in (32768, 16384, 8192, 4096, 2048, 1024, 512, 256, 128):
        if tl > L:
            continue
        if tl * per_lane_bytes > budget:
            continue
        if L >= 256 and (L + tl - 1) // tl < 2:
            continue
        return tl
    return 128


def loss_pallas(pclass, ptime, label):
    """pclass: [B, C, L] (any float dtype), ptime: [B, L], label: [B, 2, L] float."""
    B, C, L = pclass.shape

    # Split label in the wrapper: avoids an in-kernel sublane-strided slice of a
    # (B, 2, tl) tile; same HBM bytes.
    dclass = label[:, 0, :]
    dtime = label[:, 1, :]

    pc_isz = jnp.dtype(pclass.dtype).itemsize
    pt_isz = jnp.dtype(ptime.dtype).itemsize
    dc_isz = jnp.dtype(dclass.dtype).itemsize
    dt_isz = jnp.dtype(dtime.dtype).itemsize

    # Per-lane footprint: double-buffered pipelined operands + output, plus
    # in-kernel temporaries (~4 f32 copies on the [B, C, tl] path, a few [B, tl]).
    per_lane = (2 * (B * C * pc_isz + B * (pt_isz + dc_isz + dt_isz)) + 2 * 4
                + 4 * B * C * 4 + 8 * B * 4)

    cap = _vmem_capacity_bytes()
    budget = cap // 2                       # ~32 MiB on v7x, ~64 MiB on v5e/v6e
    tl = _choose_tile(L, per_lane, budget)
    grid = ((L + tl - 1) // tl,)

    working_set = tl * per_lane
    vmem_limit = int(min(max(working_set * 5 // 4, 16 * 1024 * 1024),
                         int(cap * 0.7)))

    cost = pl.CostEstimate(
        flops=6 * B * C * L + 12 * B * L,
        transcendentals=B * C * L + B * L,
        bytes_accessed=(B * C * L * pc_isz
                        + B * L * (pt_isz + dc_isz + dt_isz)
                        + L * 4),
    )

    kernel = functools.partial(_loss_kernel, L_valid=L)

    partial_sums = pl.pallas_call(
        kernel,
        out_shape=jax.ShapeDtypeStruct((1, L), jnp.float32),
        grid=grid,
        in_specs=[
            pl.BlockSpec((B, C, tl), lambda l: (0, 0, l)),   # pclass (native dtype)
            pl.BlockSpec((B, tl), lambda l: (0, l)),         # ptime
            pl.BlockSpec((B, tl), lambda l: (0, l)),         # dclass (float, cast in-kernel)
            pl.BlockSpec((B, tl), lambda l: (0, l)),         # dtime
        ],
        out_specs=pl.BlockSpec((1, tl), lambda l: (0, l)),   # per-block partial sums
        compiler_params=pltpu.CompilerParams(
            dimension_semantics=("parallel",),               # disjoint outputs -> megacore
            vmem_limit_bytes=vmem_limit,
        ),
        cost_estimate=cost,
    )(pclass, ptime, dclass, dtime)

    return jnp.sum(partial_sums)


def loss_reference(pclass, ptime, label):
    """Pure-JAX reference matching torch semantics exactly."""
    dclass = label[:, 0, :].astype(jnp.int32)
    dtime = label[:, 1, :].astype(jnp.float32)
    log_softmax = jax.nn.log_softmax(pclass.astype(jnp.float32), axis=1)  # [B,C,L]
    B, C, L = pclass.shape
    onehot = (jax.lax.broadcasted_iota(jnp.int32, (B, C, L), 1) == dclass[:, None, :])
    onehot = jnp.logical_and(onehot, (dclass != -1)[:, None, :])
    loss_class = -jnp.sum(jnp.where(onehot, log_softmax, 0.0))
    w = jnp.clip(dclass, 0, 1).astype(jnp.float32)
    loss_time = jnp.sum((ptime - dtime) ** 2 * w)
    return loss_class + loss_time / 10.0


if __name__ == "__main__":
    key = jax.random.PRNGKey(0)

    # --- primary small test (module-consistent shapes)
    B, C, L = 2, 4, 16
    k1, k2, k3, k4 = jax.random.split(key, 4)
    pclass = jax.random.normal(k1, (B, C, L), dtype=jnp.float32)
    ptime = jax.random.normal(k2, (B, L), dtype=jnp.float32)
    # targets in {-1, 0, ..., C-1}: -1 exercises ignore_index, 0 zeroes MSE weight
    dclass = jax.random.randint(k3, (B, L), -1, C).astype(jnp.float32)
    dtime = jax.random.normal(k4, (B, L), dtype=jnp.float32)
    label = jnp.stack([dclass, dtime], axis=1)  # [B, 2, L]

    out = jax.block_until_ready(loss_pallas(pclass, ptime, label))
    ref = jax.block_until_ready(loss_reference(pclass, ptime, label))
    assert jnp.allclose(out, ref, rtol=1e-5, atol=1e-5), (out, ref)

    # --- secondary test exercising the gridded / ragged-tail (masked) path
    B2, C2, L2 = 2, 4, 384
    k5, k6, k7, k8 = jax.random.split(jax.random.PRNGKey(1), 4)
    pclass2 = jax.random.normal(k5, (B2, C2, L2), dtype=jnp.float32)
    ptime2 = jax.random.normal(k6, (B2, L2), dtype=jnp.float32)
    dclass2 = jax.random.randint(k7, (B2, L2), -1, C2).astype(jnp.float32)
    dtime2 = jax.random.normal(k8, (B2, L2), dtype=jnp.float32)
    label2 = jnp.stack([dclass2, dtime2], axis=1)

    out2 = jax.block_until_ready(loss_pallas(pclass2, ptime2, label2))
    ref2 = jax.block_until_ready(loss_reference(pclass2, ptime2, label2))
    assert jnp.allclose(out2, ref2, rtol=1e-5, atol=1e-4), (out2, ref2)

    print("KERNEL_OK")
</pallas_src>

<mosaic_0001>
module attributes {stable_mosaic.version = 11 : i64} {
  func.func @_loss_kernel(%arg0: i32, %arg1: memref<2x4x16xf32, #tpu.memory_space<vmem>>, %arg2: memref<2x16xf32, #tpu.memory_space<vmem>>, %arg3: memref<2x16xf32, #tpu.memory_space<vmem>>, %arg4: memref<2x16xf32, #tpu.memory_space<vmem>>, %arg5: memref<1x16xf32, #tpu.memory_space<vmem>>) attributes {dimension_semantics = [#tpu.dimension_semantics<parallel>], iteration_bounds = array<i64: 1>, scalar_prefetch = 0 : i64, scratch_operands = 0 : i64, tpu.core_type = #tpu.core_type<tc>, window_params = [{transform_indices = @transform_0, window_bounds = array<i64: 2, 4, 16>}, {transform_indices = @transform_1, window_bounds = array<i64: 2, 16>}, {transform_indices = @transform_2, window_bounds = array<i64: 2, 16>}, {transform_indices = @transform_3, window_bounds = array<i64: 2, 16>}, {transform_indices = @transform_4, window_bounds = array<i64: 1, 16>}]} {
    %c0 = arith.constant 0 : index
    %c0_0 = arith.constant 0 : index
    %c0_1 = arith.constant 0 : index
    %0 = vector.load %arg1[%c0, %c0_0, %c0_1] : memref<2x4x16xf32, #tpu.memory_space<vmem>>, vector<2x4x16xf32>
    %c0_2 = arith.constant 0 : index
    %c0_3 = arith.constant 0 : index
    %1 = vector.load %arg2[%c0_2, %c0_3] : memref<2x16xf32, #tpu.memory_space<vmem>>, vector<2x16xf32>
    %c0_4 = arith.constant 0 : index
    %c0_5 = arith.constant 0 : index
    %2 = vector.load %arg3[%c0_4, %c0_5] : memref<2x16xf32, #tpu.memory_space<vmem>>, vector<2x16xf32>
    %3 = arith.fptosi %2 : vector<2x16xf32> to vector<2x16xi32>
    %c0_6 = arith.constant 0 : index
    %c0_7 = arith.constant 0 : index
    %4 = vector.load %arg4[%c0_6, %c0_7] : memref<2x16xf32, #tpu.memory_space<vmem>>, vector<2x16xf32>
    %5 = tpu.iota {dimensions = array<i32: 1>} : vector<1x16xi32>
    %c16_i32 = arith.constant 16 : i32
    %6 = arith.muli %arg0, %c16_i32 : i32
    %7 = vector.broadcast %6 : i32 to vector<1x16xi32>
    %8 = arith.addi %5, %7 : vector<1x16xi32>
    %c16_i32_8 = arith.constant 16 : i32
    %9 = vector.broadcast %c16_i32_8 : i32 to vector<1x16xi32>
    %10 = arith.cmpi slt, %8, %9 : vector<1x16xi32>
    %cst = arith.constant dense<0xFF800000> : vector<2x16xf32>
    %11 = vector.multi_reduction <maximumf>, %0, %cst [1] : vector<2x4x16xf32> to vector<2x16xf32>
    %12 = vector.shape_cast %11 : vector<2x16xf32> to vector<2x1x16xf32>
    %13 = vector.broadcast %12 : vector<2x1x16xf32> to vector<2x4x16xf32>
    %14 = arith.subf %0, %13 : vector<2x4x16xf32>
    %15 = math.exp %14 : vector<2x4x16xf32>
    %cst_9 = arith.constant dense<0.000000e+00> : vector<2x16xf32>
    %16 = vector.multi_reduction <add>, %15, %cst_9 [1] : vector<2x4x16xf32> to vector<2x16xf32>
    %17 = math.log %16 : vector<2x16xf32>
    %18 = tpu.iota {dimensions = array<i32: 1>} : vector<1x4x1xi32>
    %19 = vector.shape_cast %3 : vector<2x16xi32> to vector<2x1x16xi32>
    %20 = vector.broadcast %18 : vector<1x4x1xi32> to vector<2x4x16xi32>
    %21 = vector.broadcast %19 : vector<2x1x16xi32> to vector<2x4x16xi32>
    %22 = arith.cmpi eq, %20, %21 : vector<2x4x16xi32>
    %c0_i32 = arith.constant 0 : i32
    %23 = arith.sitofp %c0_i32 : i32 to f32
    %24 = vector.broadcast %23 : f32 to vector<2x4x16xf32>
    %25 = arith.select %22, %0, %24 : vector<2x4x16xi1>, vector<2x4x16xf32>
    %cst_10 = arith.constant dense<0.000000e+00> : vector<2x16xf32>
    %26 = vector.multi_reduction <add>, %25, %cst_10 [1] : vector<2x4x16xf32> to vector<2x16xf32>
    %c-1_i32 = arith.constant -1 : i32
    %27 = vector.broadcast %c-1_i32 : i32 to vector<2x16xi32>
    %28 = arith.cmpi ne, %3, %27 : vector<2x16xi32>
    %29 = vector.broadcast %10 : vector<1x16xi1> to vector<2x16xi1>
    %30 = arith.andi %28, %29 : vector<2x16xi1>
    %31 = arith.addf %17, %11 : vector<2x16xf32>
    %32 = arith.subf %31, %26 : vector<2x16xf32>
    %cst_11 = arith.constant 0.000000e+00 : f32
    %33 = vector.broadcast %cst_11 : f32 to vector<2x16xf32>
    %34 = arith.select %30, %32, %33 : vector<2x16xi1>, vector<2x16xf32>
    %35 = arith.subf %1, %4 : vector<2x16xf32>
    %c1_i32 = arith.constant 1 : i32
    %36 = vector.broadcast %c1_i32 : i32 to vector<2x16xi32>
    %37 = arith.cmpi sge, %3, %36 : vector<2x16xi32>
    %38 = vector.broadcast %10 : vector<1x16xi1> to vector<2x16xi1>
    %39 = arith.andi %37, %38 : vector<2x16xi1>
    %40 = arith.mulf %35, %35 : vector<2x16xf32>
    %cst_12 = arith.constant 1.000000e-01 : f32
    %41 = vector.broadcast %cst_12 : f32 to vector<2x16xf32>
    %42 = arith.mulf %40, %41 : vector<2x16xf32>
    %cst_13 = arith.constant 0.000000e+00 : f32
    %43 = vector.broadcast %cst_13 : f32 to vector<2x16xf32>
    %44 = arith.select %39, %42, %43 : vector<2x16xi1>, vector<2x16xf32>
    %45 = arith.addf %34, %44 : vector<2x16xf32>
    %cst_14 = arith.constant dense<0.000000e+00> : vector<16xf32>
    %46 = vector.multi_reduction <add>, %45, %cst_14 [0] : vector<2x16xf32> to vector<16xf32>
    %47 = vector.shape_cast %46 : vector<16xf32> to vector<1x16xf32>
    %c0_15 = arith.constant 0 : index
    %c0_16 = arith.constant 0 : index
    %48 = vector.load %arg5[%c0_15, %c0_16] : memref<1x16xf32, #tpu.memory_space<vmem>>, vector<1x16xf32>
    tpu.vector_store %arg5[%c0_15, %c0_16], %47 {strides = array<i32>} : memref<1x16xf32, #tpu.memory_space<vmem>>, vector<1x16xf32>,
    return
  }
  func.func @transform_0(%arg0: i32) -> (i32, i32, i32) {
    %c0_i32 = arith.constant 0 : i32
    %c0_i32_0 = arith.constant 0 : i32
    %c0_i32_1 = arith.constant 0 : i32
    return %c0_i32, %c0_i32_0, %arg0 : i32, i32, i32
  }
  func.func @transform_1(%arg0: i32) -> (i32, i32) {
    %c0_i32 = arith.constant 0 : i32
    %c0_i32_0 = arith.constant 0 : i32
    return %c0_i32, %arg0 : i32, i32
  }
  func.func @transform_2(%arg0: i32) -> (i32, i32) {
    %c0_i32 = arith.constant 0 : i32
    %c0_i32_0 = arith.constant 0 : i32
    return %c0_i32, %arg0 : i32, i32
  }
  func.func @transform_3(%arg0: i32) -> (i32, i32) {
    %c0_i32 = arith.constant 0 : i32
    %c0_i32_0 = arith.constant 0 : i32
    return %c0_i32, %arg0 : i32, i32
  }
  func.func @transform_4(%arg0: i32) -> (i32, i32) {
    %c0_i32 = arith.constant 0 : i32
    %c0_i32_0 = arith.constant 0 : i32
    return %c0_i32, %arg0 : i32, i32
  }
}

</mosaic_0001>

<llo_original>
// kernel: tpu_custom_call.1
$region0: #{tpu_custom_call.1}
  #allocation0 [shape = 'u32[]', space=smem, size = 0x4, offset = 0x4, fixed_abs, tag = 'smem constant byte address 0x4 - core index']
  #allocation1 [shape = 'u32[72,128]{1,0:T(1,128)}', space=vmem, size = 0x9000, scoped, tag = 'internal scratch']
  %s0 = inlined_call_operand.hbm [shape: f32[2,4,16], index: 0, kind: input, shape index: {}]
  %s1 = inlined_call_operand.hbm [shape: f32[2,16], index: 1, kind: input, shape index: {}]
  %s2 = inlined_call_operand.hbm [shape: f32[2,16], index: 2, kind: input, shape index: {}]
  %s3 = inlined_call_operand.vmem [shape: f32[2,16], index: 3, kind: input, shape index: {}]
  %s4 = inlined_call_operand.hbm [shape: f32[1,16], index: 4, kind: output, shape index: {}]
  %s5 = sld [smem:[#allocation0]]
  $region38: #{tpu_custom_call.1} parent=0
    _
  %s7 = ssub.s32 1, %s5
  %s8 = scalar_select 0, %s7, %s5
  $region1: #{tpu_custom_call.1} parent=0
    #allocation2 [shape = 'u8[4096]{0}', space=vmem, size = 0x1000, scoped, tag = 'input window, operand 0, single buffered']
    #allocation3 [shape = 's32[1]{0}', space=sflag, size = 0x4, scoped, tag = 'scoped memory for tpu_custom_call.1']
    #allocation4 [shape = 's32[1]{0}', space=sflag, size = 0x4, scoped, tag = 'scoped memory for tpu_custom_call.1']
    #allocation5 [shape = 'u8[1024]{0}', space=vmem, size = 0x400, scoped, tag = 'input window, operand 1, single buffered']
    #allocation6 [shape = 's32[1]{0}', space=sflag, size = 0x4, scoped, tag = 'scoped memory for tpu_custom_call.1']
    #allocation7 [shape = 'u8[1024]{0}', space=vmem, size = 0x400, scoped, tag = 'input window, operand 2, single buffered']
    #allocation8 [shape = 'u8[512]{0}', space=vmem, size = 0x400, scoped, tag = 'output window, operand 0, single buffered']
    %9 = vsyncpa [#allocation3], 0
    %10 = vsyncpa [#allocation6], 0
    %11 = vsyncpa [#allocation4], 0
    // Predicated region
    $region2: #{tpu_custom_call.1} parent=1 // pred_check
      _
    $region3: #{tpu_custom_call.1} parent=1 // pred_check_branch
      %13 = sbr.rel (0) target = $region5
    $region4: #{tpu_custom_call.1} parent=1 // pred_region
      %15 = vsyncadd [#allocation3], 0
      %s16 = sshll.u32 %s0, 4
      %s17 = int_to_ptr.hbm [resolvable:$true] %s16
      %s18 = sshll.u32 [#allocation2], 4
      %s19 = int_to_ptr.vmem [resolvable:$true] %s18
      %24 = dma.hbm_to_vmem [thread:$0]  %s17, 128, %s19, [#allocation3], 64, 64, 4
    $region5: #{tpu_custom_call.1} parent=1 // pred_fallthru
      _
    // Predicated region
    $region6: #{tpu_custom_call.1} parent=1 // pred_check
      _
    $region7: #{tpu_custom_call.1} parent=1 // pred_check_branch
      %26 = sbr.rel (0) target = $region9
    $region8: #{tpu_custom_call.1} parent=1 // pred_region
      %28 = vsyncadd [#allocation6], 0
      %s30 = sshll.u32 %s1, 4
      %s31 = int_to_ptr.hbm [resolvable:$true] %s30
      %s32 = sshll.u32 [#allocation5], 4
      %s33 = int_to_ptr.vmem [resolvable:$true] %s32
      %35 = dma.hbm_to_vmem [thread:$0]  %s31, 32, %s33, [#allocation6]
    $region9: #{tpu_custom_call.1} parent=1 // pred_fallthru
      _
    // Predicated region
    $region10: #{tpu_custom_call.1} parent=1 // pred_check
      _
    $region11: #{tpu_custom_call.1} parent=1 // pred_check_branch
      %37 = sbr.rel (0) target = $region13
    $region12: #{tpu_custom_call.1} parent=1 // pred_region
      %39 = vsyncadd [#allocation6], 0
      %s41 = sshll.u32 %s2, 4
      %s42 = int_to_ptr.hbm [resolvable:$true] %s41
      %s43 = sshll.u32 [#allocation7], 4
      %s44 = int_to_ptr.vmem [resolvable:$true] %s43
      %46 = dma.hbm_to_vmem [thread:$0]  %s42, 32, %s44, [#allocation6]
    $region13: #{tpu_custom_call.1} parent=1 // pred_fallthru
      _
    // Predicated region
    $region14: #{tpu_custom_call.1} parent=1 // pred_check
      _
    $region15: #{tpu_custom_call.1} parent=1 // pred_check_branch
      %48 = sbr.rel (0) target = $region17
    $region16: #{tpu_custom_call.1} parent=1 // pred_region
      _
    $region17: #{tpu_custom_call.1} parent=1 // pred_fallthru
      _
    // Predicated region
    $region18: #{tpu_custom_call.1} parent=1 // pred_check
      _
    $region19: #{tpu_custom_call.1} parent=1 // pred_check_branch
      %50 = sbr.rel (0) target = $region21
    $region20: #{tpu_custom_call.1} parent=1 // pred_region
      %52 = dma.done [#allocation3], 128
    $region21: #{tpu_custom_call.1} parent=1 // pred_fallthru
      _
    // Predicated region
    $region22: #{tpu_custom_call.1} parent=1 // pred_check
      _
    $region23: #{tpu_custom_call.1} parent=1 // pred_check_branch
      %54 = sbr.rel (0) target = $region25
    $region24: #{tpu_custom_call.1} parent=1 // pred_region
      %56 = dma.done [#allocation6], 32
    $region25: #{tpu_custom_call.1} parent=1 // pred_fallthru
      _
    // Predicated region
    $region26: #{tpu_custom_call.1} parent=1 // pred_check
      _
    $region27: #{tpu_custom_call.1} parent=1 // pred_check_branch
      %58 = sbr.rel (0) target = $region29
    $region28: #{tpu_custom_call.1} parent=1 // pred_region
      %60 = dma.done [#allocation6], 32
    $region29: #{tpu_custom_call.1} parent=1 // pred_fallthru
      _
    %v61 = vld [vmem:[#allocation2] sm:$0xf]
    %v62 = vld [vmem:[#allocation2 + $0x4] sm:$0xf]
    %v63 = vld [vmem:[#allocation5] sm:$0x3]
    %v64 = vld [vmem:[#allocation7] sm:$0x3]
    %v65 = vcvt.f32.s32.to.zero.pseudo %v64
    %v66 = vld [vmem:[%s3] sm:$0x3]
    %v67 = vlaneseq
    %v68 = vand.u32 %v67, 127
    %s69 = smul.u32 0, 16
    %v70 = vstv %s69
    %v71 = vadd.s32 %v68, %v70
    %vm72 = vcmp.lt.s32.totalorder %v71, 16
    %vm73 = vcmask 125952
    %v74 = vsel %vm73, %v61, -inf
    %v75 = vrot.slane %v74, 4
    %v76 = vmax.f32 %v74, %v75
    %v77 = vrot.slane %v76, 2
    %v78 = vmax.f32 %v76, %v77
    %v79 = vrot.slane %v78, 1
    %v80 = vmax.f32 %v78, %v79
    %v81 = vsel %vm73, %v62, -inf
    %v82 = vrot.slane %v81, 4
    %v83 = vmax.f32 %v81, %v82
    %v84 = vrot.slane %v83, 2
    %v85 = vmax.f32 %v83, %v84
    %v86 = vrot.slane %v85, 1
    %v87 = vmax.f32 %v85, %v86
    %v88 = vsub.f32 %v61, %v80
    %v89 = vsub.f32 %v62, %v87
    %v90 = vmul.f32 %v88, 1.442695
    %v91 = vpow.pop %v90
    %v92 = vmul.f32 %v89, 1.442695
    %v93 = vpow.pop %v92
    %v94 = vsel %vm73, %v91, 0.0
    %v95 = vrot.slane %v94, 4
    %v96 = vadd.f32 %v94, %v95
    %v97 = vrot.slane %v96, 2
    %v98 = vadd.f32 %v96, %v97
    %v99 = vrot.slane %v98, 1
    %v100 = vadd.f32 %v98, %v99
    %v101 = vsel %vm73, %v93, 0.0
    %v102 = vrot.slane %v101, 4
    %v103 = vadd.f32 %v101, %v102
    %v104 = vrot.slane %v103, 2
    %v105 = vadd.f32 %v103, %v104
    %v106 = vrot.slane %v105, 1
    %v107 = vadd.f32 %v105, %v106
    %v108 = vlog2.pop %v100
    %v109 = vmul.f32 %v108, 0.6931472
    %v110 = vlog2.pop %v107
    %v111 = vmul.f32 %v110, 0.6931472
    %v112 = vlaneseq
    %v113 = vshrl.u32 %v112, 7
    %v114 = vrot.slane %v65, 1
    %v115 = vperm.slane %v65, 0
    %v116 = vperm.slane %v114, 0
    %vm117 = vcmp.eq.s32.totalorder %v113, %v115
    %vm118 = vcmp.eq.s32.totalorder %v113, %v116
    %v119 = vsel %vm117, %v61, 0.0
    %v120 = vsel %vm118, %v62, 0.0
    %v121 = vsel %vm73, %v119, 0.0
    %v122 = vrot.slane %v121, 4
    %v123 = vadd.f32 %v121, %v122
    %v124 = vrot.slane %v123, 2
    %v125 = vadd.f32 %v123, %v124
    %v126 = vrot.slane %v125, 1
    %v127 = vadd.f32 %v125, %v126
    %v128 = vsel %vm73, %v120, 0.0
    %v129 = vrot.slane %v128, 4
    %v130 = vadd.f32 %v128, %v129
    %v131 = vrot.slane %v130, 2
    %v132 = vadd.f32 %v130, %v131
    %v133 = vrot.slane %v132, 1
    %v134 = vadd.f32 %v132, %v133
    %vm135 = vcmp.ne.s32.totalorder %v65, 4294967295
    %v136 = vsel %vm72, 1, 0
    %vm137 = vcmp.eq.s32.totalorder %v136, 1
    %vm138 = vmand %vm135, %vm137
    %v139 = vadd.f32 %v109, %v80
    %v140 = vadd.f32 %v111, %v87
    %v141 = vsub.f32 %v139, %v127
    %v142 = vsub.f32 %v140, %v134
    %vm145 = vcmask 1041409
    %v146 = vsel %vm145, %v142, %v141
    %v148 = vsel %vm138, %v146, 0.0
    %v149 = vsub.f32 %v63, %v66
    %vm150 = vcmp.ge.s32.totalorder %v65, 1
    %vm151 = vmand %vm150, %vm137
    %v152 = vmul.f32 %v149, %v149
    %v153 = vmul.f32 %v152, 0.1
    %v154 = vsel %vm151, %v153, 0.0
    %v155 = vadd.f32 %v148, %v154
    %vm156 = vcmask 123904
    %v157 = vsel %vm156, %v155, 0.0
    %v158 = vrot.slane %v157, 4
    %v159 = vadd.f32 %v157, %v158
    %v160 = vrot.slane %v159, 2
    %v161 = vadd.f32 %v159, %v160
    %v162 = vrot.slane %v161, 1
    %v163 = vadd.f32 %v161, %v162
    %vm164 = vcmask 122880
    %165 = vst.msk [vmem:[#allocation8] sm:$0x1] %vm164, %v163
    // Predicated region
    $region30: #{tpu_custom_call.1} parent=1 // pred_check
      _
    $region31: #{tpu_custom_call.1} parent=1 // pred_check_branch
      %167 = sbr.rel (0) target = $region33
    $region32: #{tpu_custom_call.1} parent=1 // pred_region
      %169 = vsyncadd [#allocation4], 0
      %s171 = sshll.u32 [#allocation8], 4
      %s172 = int_to_ptr.vmem [resolvable:$true] %s171
      %s173 = sshll.u32 %s4, 4
      %s174 = int_to_ptr.hbm [resolvable:$true] %s173
      %176 = dma.vmem_to_hbm [thread:$0]  %s172, 16, %s174, [#allocation4]
    $region33: #{tpu_custom_call.1} parent=1 // pred_fallthru
      _
    // Predicated region
    $region34: #{tpu_custom_call.1} parent=1 // pred_check
      _
    $region35: #{tpu_custom_call.1} parent=1 // pred_check_branch
      %178 = sbr.rel (0) target = $region37
    $region36: #{tpu_custom_call.1} parent=1 // pred_region
      %180 = dma.done [#allocation4], 16
    $region37: #{tpu_custom_call.1} parent=1 // pred_fallthru
      _
    %181 = vsyncpa [#allocation3], 1
    %182 = vsyncpa [#allocation6], 1
    %183 = vsyncpa [#allocation4], 1

</llo_original>
